<compile_context>
chip_gen: v6e
topology: v6e:2x2x1
jax: 0.10.0
libtpu: 0.0.40
codegen_flags: <defaults>
</compile_context>

<pallas_src>
import jax
import jax.numpy as jnp
import numpy as np
from jax.experimental import pallas as pl
from jax.experimental.pallas import tpu as pltpu

POOL_KS = (5, 9, 13)        # original kernel sizes (kept for the reference impl)
_VMEM_LIMIT = 32 * 1024 * 1024   # safe on v5e/v6e/v7x; raise for huge feature maps


def _hardswish(y):
    return y * jnp.clip(y + 3.0, 0.0, 6.0) * (1.0 / 6.0)


# --------------------------------------------------------------------------- #
# cv1: 1x1 Conv + folded BatchNorm + Hardswish, tiled over M = N*H*W
# --------------------------------------------------------------------------- #
def _conv1_kernel(x_ref, w_ref, s_ref, b_ref, o_ref):
    # x: (TM, Cin), w: (Cin, Cout), s/b: (1, Cout) -> o: (TM, Cout)
    y = jnp.dot(x_ref[...], w_ref[...], preferred_element_type=jnp.float32)
    y = y * s_ref[...] + b_ref[...]
    o_ref[...] = _hardswish(y).astype(o_ref.dtype)


def pw_conv_bn_hswish(x2d, w, scale, bias, *, tm=256, matmul_dtype=jnp.float32):
    M, cin = x2d.shape
    cout = w.shape[1]
    if x2d.dtype != matmul_dtype:
        x2d = x2d.astype(matmul_dtype)
        w = w.astype(matmul_dtype)
    tm = min(tm, M)
    return pl.pallas_call(
        _conv1_kernel,
        out_shape=jax.ShapeDtypeStruct((M, cout), jnp.float32),
        grid=(pl.cdiv(M, tm),),
        in_specs=[
            pl.BlockSpec((tm, cin), lambda i: (i, 0)),
            pl.BlockSpec((cin, cout), lambda i: (0, 0)),   # VMEM-resident
            pl.BlockSpec((1, cout), lambda i: (0, 0)),
            pl.BlockSpec((1, cout), lambda i: (0, 0)),
        ],
        out_specs=pl.BlockSpec((tm, cout), lambda i: (i, 0)),
        compiler_params=pltpu.CompilerParams(
            dimension_semantics=("parallel",),
            vmem_limit_bytes=_VMEM_LIMIT),
    )(x2d, w, scale.reshape(1, cout), bias.reshape(1, cout))


# --------------------------------------------------------------------------- #
# cv2: 1x1 Conv + BN + Hardswish over the virtual concat [x, m5, m9, m13]
#      (w2 split row-wise into 4 blocks; no concat tensor is ever materialized)
# --------------------------------------------------------------------------- #
def _conv2_kernel(x0_ref, x1_ref, x2_ref, x3_ref,
                  w0_ref, w1_ref, w2_ref, w3_ref, s_ref, b_ref, o_ref):
    y = jnp.dot(x0_ref[...], w0_ref[...], preferred_element_type=jnp.float32)
    y += jnp.dot(x1_ref[...], w1_ref[...], preferred_element_type=jnp.float32)
    y += jnp.dot(x2_ref[...], w2_ref[...], preferred_element_type=jnp.float32)
    y += jnp.dot(x3_ref[...], w3_ref[...], preferred_element_type=jnp.float32)
    y = y * s_ref[...] + b_ref[...]
    o_ref[...] = _hardswish(y).astype(o_ref.dtype)


def pw_conv4_bn_hswish(xs, ws, scale, bias, *, tm=256, matmul_dtype=jnp.float32):
    # xs: 4 arrays (M, c_), ws: 4 arrays (c_, Cout)
    M, c_ = xs[0].shape
    cout = ws[0].shape[1]
    if xs[0].dtype != matmul_dtype:
        xs = tuple(x.astype(matmul_dtype) for x in xs)
        ws = tuple(w.astype(matmul_dtype) for w in ws)
    tm = min(tm, M)
    act_spec = pl.BlockSpec((tm, c_), lambda i: (i, 0))
    w_spec = pl.BlockSpec((c_, cout), lambda i: (0, 0))
    v_spec = pl.BlockSpec((1, cout), lambda i: (0, 0))
    return pl.pallas_call(
        _conv2_kernel,
        out_shape=jax.ShapeDtypeStruct((M, cout), jnp.float32),
        grid=(pl.cdiv(M, tm),),
        in_specs=[act_spec, act_spec, act_spec, act_spec,
                  w_spec, w_spec, w_spec, w_spec, v_spec, v_spec],
        out_specs=pl.BlockSpec((tm, cout), lambda i: (i, 0)),
        compiler_params=pltpu.CompilerParams(
            dimension_semantics=("parallel",),
            vmem_limit_bytes=_VMEM_LIMIT),
    )(*xs, *ws, scale.reshape(1, cout), bias.reshape(1, cout))


# --------------------------------------------------------------------------- #
# SPPF-style cascaded max pooling: one kernel does H-pool + W-pool for all
# three effective kernel sizes (5, 9, 13) on a (1, H, W, Cb) block.
# --------------------------------------------------------------------------- #
def _maxpool5_same_2d(x):
    """Stride-1, k=5, 'same' 2-D max pool over the first two axes of (H, W, C).

    Edge-replicate padding is used; for max pooling it is exactly equivalent
    to -inf padding (the clamped index always lies inside the valid window).
    Only 2 pad rows/cols per axis (k=5) -> tiny VMEM overhead.
    """
    H, W, _ = x.shape
    # pool along H (leading / major axis)
    xp = jnp.concatenate([x[0:1], x[0:1], x, x[H - 1:H], x[H - 1:H]], axis=0)
    r = xp[0:H]
    for i in range(1, 5):
        r = jnp.maximum(r, xp[i:i + H])
    # pool along W (sublane axis)
    rp = jnp.concatenate([r[:, 0:1], r[:, 0:1], r, r[:, W - 1:W], r[:, W - 1:W]], axis=1)
    out = rp[:, 0:W]
    for i in range(1, 5):
        out = jnp.maximum(out, rp[:, i:i + W])
    return out


def _sppf_pool_kernel(x_ref, m5_ref, m9_ref, m13_ref):
    x = x_ref[0]                       # (H, W, Cb)
    m5 = _maxpool5_same_2d(x)          # == maxpool k=5
    m9 = _maxpool5_same_2d(m5)         # == maxpool k=9
    m13 = _maxpool5_same_2d(m9)        # == maxpool k=13
    m5_ref[0] = m5
    m9_ref[0] = m9
    m13_ref[0] = m13


def sppf_maxpools(x_nhwc):
    """x: (N, H, W, C) -> (m5, m9, m13), each (N, H, W, C) float32."""
    N, H, W, C = x_nhwc.shape
    cb = C if C <= 128 else 128        # lane-sized channel chunks bound VMEM use
    grid = (N, pl.cdiv(C, cb))
    in_spec = pl.BlockSpec((1, H, W, cb), lambda n, j: (n, 0, 0, j))
    out_spec = pl.BlockSpec((1, H, W, cb), lambda n, j: (n, 0, 0, j))
    out_sds = jax.ShapeDtypeStruct((N, H, W, C), jnp.float32)
    return pl.pallas_call(
        _sppf_pool_kernel,
        out_shape=(out_sds, out_sds, out_sds),
        grid=grid,
        in_specs=[in_spec],
        out_specs=(out_spec, out_spec, out_spec),
        compiler_params=pltpu.CompilerParams(
            dimension_semantics=("parallel", "parallel"),
            vmem_limit_bytes=_VMEM_LIMIT),
    )(x_nhwc)


# --------------------------------------------------------------------------- #
# SPP forward (wrapper) and parameter initialization
# --------------------------------------------------------------------------- #
def spp_forward(x_nchw, params, *, tm=256, matmul_dtype=jnp.float32):
    # matmul_dtype=jnp.bfloat16 recommended on v6e/v7x for large channel counts
    # (f32 accumulation and f32 BN/Hardswish are kept either way).
    N, C1, H, W = x_nchw.shape
    M = N * H * W
    x_nhwc = jnp.transpose(x_nchw, (0, 2, 3, 1))
    c_ = params["w1"].shape[1]
    c2 = params["w2"].shape[1]

    # cv1: 1x1 conv + BN + Hardswish (tiled matmul)
    y1 = pw_conv_bn_hswish(x_nhwc.reshape(M, C1), params["w1"], params["s1"],
                           params["b1"], tm=tm, matmul_dtype=matmul_dtype)     # (M, c_)
    y1_nhwc = y1.reshape(N, H, W, c_)                                          # free reshape

    # SPPF cascade pooling (single fused Pallas kernel, both axes)
    m5, m9, m13 = sppf_maxpools(y1_nhwc)

    # cv2 over the virtual concat [y1, m5, m9, m13]: split w2 row-wise.
    w2 = params["w2"]
    w2_parts = tuple(w2[i * c_:(i + 1) * c_] for i in range(4))
    y2 = pw_conv4_bn_hswish(
        (y1, m5.reshape(M, c_), m9.reshape(M, c_), m13.reshape(M, c_)),
        w2_parts, params["s2"], params["b2"], tm=tm, matmul_dtype=matmul_dtype)  # (M, c2)

    return jnp.transpose(y2.reshape(N, H, W, c2), (0, 3, 1, 2))  # back to NCHW


def init_params(key, c1, c2):
    c_ = c1 // 2
    cin2 = c_ * (len(POOL_KS) + 1)
    ks = jax.random.split(key, 10)

    def bn_fold(kg, kb, km, kv, c):
        gamma = jax.random.uniform(kg, (c,), jnp.float32, 0.5, 1.5)
        beta = jax.random.normal(kb, (c,), jnp.float32) * 0.1
        mean = jax.random.normal(km, (c,), jnp.float32) * 0.1
        var = jax.random.uniform(kv, (c,), jnp.float32, 0.5, 1.5)
        scale = gamma / jnp.sqrt(var + 1e-5)
        bias = beta - mean * scale
        return scale, bias

    w1 = jax.random.normal(ks[0], (c1, c_), jnp.float32) * 0.2
    s1, b1 = bn_fold(ks[1], ks[2], ks[3], ks[4], c_)
    w2 = jax.random.normal(ks[5], (cin2, c2), jnp.float32) * 0.2
    s2, b2 = bn_fold(ks[6], ks[7], ks[8], ks[9], c2)
    return dict(w1=w1, s1=s1, b1=b1, w2=w2, s2=s2, b2=b2)


# Pure-JAX reference (same math as the PyTorch module, no Pallas).
def spp_reference(x_nchw, params):
    x = jnp.transpose(x_nchw, (0, 2, 3, 1))  # NHWC

    def conv(x, w, s, b):
        y = jnp.einsum("nhwc,cd->nhwd", x, w) * s + b
        return y * jnp.clip(y + 3.0, 0.0, 6.0) / 6.0

    y1 = conv(x, params["w1"], params["s1"], params["b1"])
    pools = []
    for k in POOL_KS:
        p = k // 2
        pools.append(
            jax.lax.reduce_window(
                y1, -jnp.inf, jax.lax.max,
                window_dimensions=(1, k, k, 1),
                window_strides=(1, 1, 1, 1),
                padding=((0, 0), (p, p), (p, p), (0, 0)),
            )
        )
    cat = jnp.concatenate([y1] + pools, axis=-1)
    y2 = conv(cat, params["w2"], params["s2"], params["b2"])
    return jnp.transpose(y2, (0, 3, 1, 2))


if __name__ == "__main__":
    key = jax.random.PRNGKey(0)
    kx, kp = jax.random.split(key)
    N, C1, H, W = 2, 8, 16, 16
    C2 = 8
    x = jax.random.normal(kx, (N, C1, H, W), jnp.float32)
    params = init_params(kp, C1, C2)

    out = jax.block_until_ready(spp_forward(x, params))
    ref = jax.block_until_ready(spp_reference(x, params))
    assert out.shape == (N, C2, H, W) and out.dtype == jnp.float32
    np.testing.assert_allclose(np.asarray(out), np.asarray(ref), rtol=2e-2, atol=2e-2)
    print("KERNEL_OK")
</pallas_src>

<mosaic_0001>
module attributes {stable_mosaic.version = 11 : i64} {
  func.func @_conv1_kernel(%arg0: i32, %arg1: memref<256x8xf32, #tpu.memory_space<vmem>>, %arg2: memref<8x4xf32, #tpu.memory_space<vmem>>, %arg3: memref<1x4xf32, #tpu.memory_space<vmem>>, %arg4: memref<1x4xf32, #tpu.memory_space<vmem>>, %arg5: memref<256x4xf32, #tpu.memory_space<vmem>>) attributes {dimension_semantics = [#tpu.dimension_semantics<parallel>], iteration_bounds = array<i64: 2>, scalar_prefetch = 0 : i64, scratch_operands = 0 : i64, tpu.core_type = #tpu.core_type<tc>, window_params = [{transform_indices = @transform_0, window_bounds = array<i64: 256, 8>}, {pipeline_mode = #tpu.pipeline_mode<synchronous>, transform_indices = @transform_1, window_bounds = array<i64: 8, 4>}, {pipeline_mode = #tpu.pipeline_mode<synchronous>, transform_indices = @transform_2, window_bounds = array<i64: 1, 4>}, {pipeline_mode = #tpu.pipeline_mode<synchronous>, transform_indices = @transform_3, window_bounds = array<i64: 1, 4>}, {transform_indices = @transform_4, window_bounds = array<i64: 256, 4>}]} {
    %c0 = arith.constant 0 : index
    %c0_0 = arith.constant 0 : index
    %0 = vector.load %arg1[%c0, %c0_0] : memref<256x8xf32, #tpu.memory_space<vmem>>, vector<256x8xf32>
    %c0_1 = arith.constant 0 : index
    %c0_2 = arith.constant 0 : index
    %1 = vector.load %arg2[%c0_1, %c0_2] : memref<8x4xf32, #tpu.memory_space<vmem>>, vector<8x4xf32>
    %cst = arith.constant dense<0.000000e+00> : vector<256x4xf32>
    %2 = tpu.matmul %0, %1, %cst {dimension_numbers = #tpu.dot_dimension_numbers<[1], [0], [0], [1], [0, 0, 1, 1], [], []>} : vector<256x8xf32>, vector<8x4xf32>, vector<256x4xf32> -> vector<256x4xf32>
    %c0_3 = arith.constant 0 : index
    %c0_4 = arith.constant 0 : index
    %3 = vector.load %arg3[%c0_3, %c0_4] : memref<1x4xf32, #tpu.memory_space<vmem>>, vector<1x4xf32>
    %4 = vector.broadcast %3 : vector<1x4xf32> to vector<256x4xf32>
    %5 = arith.mulf %2, %4 : vector<256x4xf32>
    %c0_5 = arith.constant 0 : index
    %c0_6 = arith.constant 0 : index
    %6 = vector.load %arg4[%c0_5, %c0_6] : memref<1x4xf32, #tpu.memory_space<vmem>>, vector<1x4xf32>
    %7 = vector.broadcast %6 : vector<1x4xf32> to vector<256x4xf32>
    %8 = arith.addf %5, %7 : vector<256x4xf32>
    %cst_7 = arith.constant 3.000000e+00 : f32
    %9 = vector.broadcast %cst_7 : f32 to vector<256x4xf32>
    %10 = arith.addf %8, %9 : vector<256x4xf32>
    %cst_8 = arith.constant 0.000000e+00 : f32
    %cst_9 = arith.constant 6.000000e+00 : f32
    %11 = vector.broadcast %cst_8 : f32 to vector<256x4xf32>
    %12 = arith.maximumf %11, %10 : vector<256x4xf32>
    %13 = vector.broadcast %cst_9 : f32 to vector<256x4xf32>
    %14 = arith.minimumf %13, %12 : vector<256x4xf32>
    %15 = arith.mulf %8, %14 : vector<256x4xf32>
    %cst_10 = arith.constant 0.166666672 : f32
    %16 = vector.broadcast %cst_10 : f32 to vector<256x4xf32>
    %17 = arith.mulf %15, %16 : vector<256x4xf32>
    %c0_11 = arith.constant 0 : index
    %c0_12 = arith.constant 0 : index
    %18 = vector.load %arg5[%c0_11, %c0_12] : memref<256x4xf32, #tpu.memory_space<vmem>>, vector<256x4xf32>
    tpu.vector_store %arg5[%c0_11, %c0_12], %17 {strides = array<i32>} : memref<256x4xf32, #tpu.memory_space<vmem>>, vector<256x4xf32>,
    return
  }
  func.func @transform_0(%arg0: i32) -> (i32, i32) {
    %c0_i32 = arith.constant 0 : i32
    %c0_i32_0 = arith.constant 0 : i32
    return %arg0, %c0_i32 : i32, i32
  }
  func.func @transform_1(%arg0: i32) -> (i32, i32) {
    %c0_i32 = arith.constant 0 : i32
    %c0_i32_0 = arith.constant 0 : i32
    %c0_i32_1 = arith.constant 0 : i32
    return %c0_i32, %c0_i32_0 : i32, i32
  }
  func.func @transform_2(%arg0: i32) -> (i32, i32) {
    %c0_i32 = arith.constant 0 : i32
    %c0_i32_0 = arith.constant 0 : i32
    %c0_i32_1 = arith.constant 0 : i32
    return %c0_i32, %c0_i32_0 : i32, i32
  }
  func.func @transform_3(%arg0: i32) -> (i32, i32) {
    %c0_i32 = arith.constant 0 : i32
    %c0_i32_0 = arith.constant 0 : i32
    %c0_i32_1 = arith.constant 0 : i32
    return %c0_i32, %c0_i32_0 : i32, i32
  }
  func.func @transform_4(%arg0: i32) -> (i32, i32) {
    %c0_i32 = arith.constant 0 : i32
    %c0_i32_0 = arith.constant 0 : i32
    return %arg0, %c0_i32 : i32, i32
  }
}

</mosaic_0001>

<llo_original>
// kernel: tpu_custom_call.1
$region0: #{tpu_custom_call.1}
  #allocation0 [shape = 'u32[]', space=smem, size = 0x4, offset = 0x4, fixed_abs, tag = 'smem constant byte address 0x4 - core index']
  #allocation1 [shape = 'u32[144,128]{1,0:T(1,128)}', space=vmem, size = 0x12000, scoped, tag = 'internal scratch']
  %s0 = inlined_call_operand.vmem [shape: f32[512,8], index: 0, kind: input, shape index: {}]
  %s1 = inlined_call_operand.vmem [shape: f32[8,4], index: 1, kind: input, shape index: {}]
  %s2 = inlined_call_operand.vmem [shape: f32[1,4], index: 2, kind: input, shape index: {}]
  %s3 = inlined_call_operand.vmem [shape: f32[1,4], index: 3, kind: input, shape index: {}]
  %s4 = inlined_call_operand.vmem [shape: f32[512,4], index: 4, kind: output, shape index: {}]
  %s5 = sld [smem:[#allocation0]]
  $region49: #{tpu_custom_call.1} parent=0
    _
  %s7 = ssub.s32 1, %s5
  %s8 = scalar_select 0, %s7, %s5
  loop: start=0, step=1, limit=4
  $region2: #{tpu_custom_call.1} parent=0 // loop_pre_header
    _
  $region3: #{tpu_custom_call.1} parent=0 // loop_header
    %s10 = sphi 0, %s14
    %p11 = scmp.ge.s32.totalorder %s10, 4
    %s20 = sphi 0, %s22
    %s23 = sphi 0, %s20
    %s24 = sphi 0, %s23
    %s40 = sphi 0, %s24
    %s44 = sphi 0, %s44
    %s46 = sphi 0, %s44
    %s47 = sphi 0, %s46
    %s61 = sphi 0, %s47
    %s65 = sphi 0, %s65
    %s67 = sphi 0, %s65
    %s68 = sphi 0, %s67
    %s82 = sphi 0, %s68
    %s86 = sphi 0, %s86
    %s88 = sphi 0, %s86
    %s89 = sphi 0, %s88
    %s103 = sphi 0, %s89
    %s109 = sphi 0, %s111
    %s112 = sphi 0, %s109
    %s113 = sphi 0, %s112
    %s129 = sphi 0, %s113
  $region4: #{tpu_custom_call.1} parent=0 // loop_header_branch
    %13 = sbr.rel (%p11) target = $region8
  $region5: #{tpu_custom_call.1} parent=0 // loop_body
    %s15 = ssub.s32 %s10, 1
    %s16 = ssub.s32 %s10, 2
    %s17 = sadd.s32 %s10, 1
    %s18 = ssub.s32 %s10, %s17
    %p19 = scmp.eq.s32.totalorder %s18, 0
    %s21 = sadd.s32 %s20, 1
    %s22 = scalar_select %p19, %s20, %s21
    %p25 = pneg %p19
    %p26 = scmp.eq.s32.totalorder %s10, 1
    %p27 = por %p25, %p26
    %p28 = scmp.ne.s32.totalorder %s20, %s23
    %p29 = scmp.eq.s32.totalorder %s10, 0
    %p30 = por %p28, %p29
    %p31 = scmp.ne.s32.totalorder %s20, %s23
    %p32 = scmp.eq.s32.totalorder %s15, 1
    %p33 = por %p31, %p32
    %p34 = scmp.ne.s32.totalorder %s23, %s24
    %p35 = scmp.eq.s32.totalorder %s15, 0
    %p36 = por %p34, %p35
    %p37 = scmp.ne.s32.totalorder %s23, %s24
    %p38 = scmp.eq.s32.totalorder %s16, 1
    %p39 = por %p37, %p38
    %p41 = scmp.ne.s32.totalorder %s24, %s40
    %p42 = scmp.eq.s32.totalorder %s16, 0
    %p43 = por %p41, %p42
    %s45 = sadd.s32 %s44, 1
    %p48 = scmp.eq.s32.totalorder %s10, 1
    %p49 = scmp.ne.s32.totalorder %s44, %s46
    %p50 = scmp.eq.s32.totalorder %s10, 0
    %p51 = por %p49, %p50
    %p52 = scmp.ne.s32.totalorder %s44, %s46
    %p53 = scmp.eq.s32.totalorder %s15, 1
    %p54 = por %p52, %p53
    %p55 = scmp.ne.s32.totalorder %s46, %s47
    %p56 = scmp.eq.s32.totalorder %s15, 0
    %p57 = por %p55, %p56
    %p58 = scmp.ne.s32.totalorder %s46, %s47
    %p59 = scmp.eq.s32.totalorder %s16, 1
    %p60 = por %p58, %p59
    %p62 = scmp.ne.s32.totalorder %s47, %s61
    %p63 = scmp.eq.s32.totalorder %s16, 0
    %p64 = por %p62, %p63
    %s66 = sadd.s32 %s65, 1
    %p69 = scmp.eq.s32.totalorder %s10, 1
    %p70 = scmp.ne.s32.totalorder %s65, %s67
    %p71 = scmp.eq.s32.totalorder %s10, 0
    %p72 = por %p70, %p71
    %p73 = scmp.ne.s32.totalorder %s65, %s67
    %p74 = scmp.eq.s32.totalorder %s15, 1
    %p75 = por %p73, %p74
    %p76 = scmp.ne.s32.totalorder %s67, %s68
    %p77 = scmp.eq.s32.totalorder %s15, 0
    %p78 = por %p76, %p77
    %p79 = scmp.ne.s32.totalorder %s67, %s68
    %p80 = scmp.eq.s32.totalorder %s16, 1
    %p81 = por %p79, %p80
    %p83 = scmp.ne.s32.totalorder %s68, %s82
    %p84 = scmp.eq.s32.totalorder %s16, 0
    %p85 = por %p83, %p84
    %s87 = sadd.s32 %s86, 1
    %p90 = scmp.eq.s32.totalorder %s10, 1
    %p91 = scmp.ne.s32.totalorder %s86, %s88
    %p92 = scmp.eq.s32.totalorder %s10, 0
    %p93 = por %p91, %p92
    %p94 = scmp.ne.s32.totalorder %s86, %s88
    %p95 = scmp.eq.s32.totalorder %s15, 1
    %p96 = por %p94, %p95
    %p97 = scmp.ne.s32.totalorder %s88, %s89
    %p98 = scmp.eq.s32.totalorder %s15, 0
    %p99 = por %p97, %p98
    %p100 = scmp.ne.s32.totalorder %s88, %s89
    %p101 = scmp.eq.s32.totalorder %s16, 1
    %p102 = por %p100, %p101
    %p104 = scmp.ne.s32.totalorder %s89, %s103
    %p105 = scmp.eq.s32.totalorder %s16, 0
    %p106 = por %p104, %p105
    %s107 = ssub.s32 %s10, %s17
    %p108 = scmp.eq.s32.totalorder %s107, 0
    %s110 = sadd.s32 %s109, 1
    %s111 = scalar_select %p108, %s109, %s110
    %p114 = pneg %p108
    %p115 = scmp.eq.s32.totalorder %s10, 1
    %p116 = por %p114, %p115
    %p117 = scmp.ne.s32.totalorder %s109, %s112
    %p118 = scmp.eq.s32.totalorder %s10, 0
    %p119 = por %p117, %p118
    %p120 = scmp.ne.s32.totalorder %s109, %s112
    %p121 = scmp.eq.s32.totalorder %s15, 1
    %p122 = por %p120, %p121
    %p123 = scmp.ne.s32.totalorder %s112, %s113
    %p124 = scmp.eq.s32.totalorder %s15, 0
    %p125 = por %p123, %p124
    %p126 = scmp.ne.s32.totalorder %s112, %s113
    %p127 = scmp.eq.s32.totalorder %s16, 1
    %p128 = por %p126, %p127
    %p130 = scmp.ne.s32.totalorder %s113, %s129
    %p131 = scmp.eq.s32.totalorder %s16, 0
    %p132 = por %p130, %p131
    %p133 = scmp.le.s32.totalorder 1, %s10
    %p134 = scmp.lt.s32.totalorder %s10, 3
    %p135 = pnand %p133, %p134
    %p136 = pneg %p135
    // Predicated region
    $region9: #{tpu_custom_call.1} parent=5 // pred_check
      _
    $region10: #{tpu_custom_call.1} parent=5 // pred_check_branch
      %138 = sbr.rel (%p135) target = $region12
    $region11: #{tpu_custom_call.1} parent=5 // pred_region
      %s139 = ssub.s32 %s10, 1
      // Predicated region
      $region13: #{tpu_custom_call.1} parent=11 // pred_check
        %p140 = pneg %p57
      $region14: #{tpu_custom_call.1} parent=11 // pred_check_branch
        %142 = sbr.rel (%p140) target = $region16
      $region15: #{tpu_custom_call.1} parent=11 // pred_region
        _
      $region16: #{tpu_custom_call.1} parent=11 // pred_fallthru
        _
      // Predicated region
      $region17: #{tpu_custom_call.1} parent=11 // pred_check
        %p143 = pneg %p78
      $region18: #{tpu_custom_call.1} parent=11 // pred_check_branch
        %145 = sbr.rel (%p143) target = $region20
      $region19: #{tpu_custom_call.1} parent=11 // pred_region
        _
      $region20: #{tpu_custom_call.1} parent=11 // pred_fallthru
        _
      // Predicated region
      $region21: #{tpu_custom_call.1} parent=11 // pred_check
        %p146 = pneg %p99
      $region22: #{tpu_custom_call.1} parent=11 // pred_check_branch
        %148 = sbr.rel (%p146) target = $region24
      $region23: #{tpu_custom_call.1} parent=11 // pred_region
        _
      $region24: #{tpu_custom_call.1} parent=11 // pred_fallthru
        _
    $region12: #{tpu_custom_call.1} parent=5 // pred_fallthru
      _
    %p149 = scmp.lt.s32.totalorder %s10, 2
    // Predicated region
    $region25: #{tpu_custom_call.1} parent=5 // pred_check
      %p150 = pneg %p149
    $region26: #{tpu_custom_call.1} parent=5 // pred_check_branch
      %152 = sbr.rel (%p150) target = $region28
    $region27: #{tpu_custom_call.1} parent=5 // pred_region
      // Predicated region
      $region29: #{tpu_custom_call.1} parent=27 // pred_check
        %p153 = pneg %p30
      $region30: #{tpu_custom_call.1} parent=27 // pred_check_branch
        %155 = sbr.rel (%p153) target = $region32
      $region31: #{tpu_custom_call.1} parent=27 // pred_region
        %s156 = smul.u32 32, %s10
        %p157 = scmp.lt.s32.totalorder %s156, 63
        %s158 = scalar_select %p157, %s156, 63
        %s159 = smul.addr %s158, 8
        %s160 = scalar_lea.vmem %s0, %s159
        %s161 = smul.u32 32, %s10
      $region32: #{tpu_custom_call.1} parent=27 // pred_fallthru
        _
    $region28: #{tpu_custom_call.1} parent=5 // pred_fallthru
      _
    %p162 = scmp.le.s32.totalorder 1, %s10
    %p163 = scmp.lt.s32.totalorder %s10, 3
    %p164 = pnand %p162, %p163
    %p165 = pneg %p164
    // Predicated region
    $region33: #{tpu_custom_call.1} parent=5 // pred_check
      _
    $region34: #{tpu_custom_call.1} parent=5 // pred_check_branch
      %167 = sbr.rel (%p164) target = $region36
    $region35: #{tpu_custom_call.1} parent=5 // pred_region
      %s168 = ssub.s32 %s10, 1
      %s169 = smul.u32 32, %s15
      %p170 = scmp.lt.s32.totalorder %s169, 63
      %s171 = scalar_select %p170, %s169, 63
      %s172 = smul.addr %s171, 8
      %s173 = scalar_lea.vmem %s0, %s172
      %p174 = pneg %p36
      %p175 = pneg %p33
      %p176 = pneg %p57
      %p177 = pneg %p54
      %p178 = pneg %p78
      %p179 = pneg %p75
      %p180 = pneg %p99
      %p181 = pneg %p96
      %p182 = pneg %p125
      %p183 = pneg %p122
      %s184 = smul.u32 32, %s15
      %p185 = scmp.lt.s32.totalorder %s184, 63
      %s186 = scalar_select %p185, %s184, 63
      %s187 = smul.addr %s186, 8
      %s188 = scalar_lea.vmem %s4, %s187
      %s189 = smul.u32 32, %s15
      %p190 = scmp.lt.s32.totalorder %s189, 63
      %s191 = scalar_select %p190, %s189, 63
      %s192 = smul.addr %s191, 8
      %s193 = scalar_lea.vmem %s0, %s192
      %s194 = smul.u32 32, %s15
      %s195 = smul.u32 32, %s15
      %p196 = scmp.lt.s32.totalorder %s195, 63
      %s197 = scalar_select %p196, %s195, 63
      %s198 = smul.addr %s197, 8
      %s199 = scalar_lea.vmem %s4, %s198
      %s200 = smul.u32 32, %s15
      %v201 = vld [vmem:[%s193] sm:$0xff]
      %v202 = vld [vmem:[%s193 + $0x8] sm:$0xff]
      %v203 = vld [vmem:[%s193 + $0x10] sm:$0xff]
      %v204 = vld [vmem:[%s193 + $0x18] sm:$0xff]
      %v205 = vld [vmem:[%s193 + $0x20] sm:$0xff]
      %v206 = vld [vmem:[%s193 + $0x28] sm:$0xff]
      %v207 = vld [vmem:[%s193 + $0x30] sm:$0xff]
      %v208 = vld [vmem:[%s193 + $0x38] sm:$0xff]
      %v209 = vld [vmem:[%s193 + $0x40] sm:$0xff]
      %v210 = vld [vmem:[%s193 + $0x48] sm:$0xff]
      %v211 = vld [vmem:[%s193 + $0x50] sm:$0xff]
      %v212 = vld [vmem:[%s193 + $0x58] sm:$0xff]
      %v213 = vld [vmem:[%s193 + $0x60] sm:$0xff]
      %v214 = vld [vmem:[%s193 + $0x68] sm:$0xff]
      %v215 = vld [vmem:[%s193 + $0x70] sm:$0xff]
      %v216 = vld [vmem:[%s193 + $0x78] sm:$0xff]
      %v217 = vld [vmem:[%s193 + $0x80] sm:$0xff]
      %v218 = vld [vmem:[%s193 + $0x88] sm:$0xff]
      %v219 = vld [vmem:[%s193 + $0x90] sm:$0xff]
      %v220 = vld [vmem:[%s193 + $0x98] sm:$0xff]
      %v221 = vld [vmem:[%s193 + $0xa0] sm:$0xff]
      %v222 = vld [vmem:[%s193 + $0xa8] sm:$0xff]
      %v223 = vld [vmem:[%s193 + $0xb0] sm:$0xff]
      %v224 = vld [vmem:[%s193 + $0xb8] sm:$0xff]
      %v225 = vld [vmem:[%s193 + $0xc0] sm:$0xff]
      %v226 = vld [vmem:[%s193 + $0xc8] sm:$0xff]
      %v227 = vld [vmem:[%s193 + $0xd0] sm:$0xff]
      %v228 = vld [vmem:[%s193 + $0xd8] sm:$0xff]
      %v229 = vld [vmem:[%s193 + $0xe0] sm:$0xff]
      %v230 = vld [vmem:[%s193 + $0xe8] sm:$0xff]
      %v231 = vld [vmem:[%s193 + $0xf0] sm:$0xff]
      %v232 = vld [vmem:[%s193 + $0xf8] sm:$0xff]
      %v233 = vld [vmem:[%s1] sm:$0xff]
      %vm234 = vcmask 64512
      %v236 = vsel %vm234, %v201, 0
      %v239 = vsel %vm234, %v202, 0
      %v242 = vsel %vm234, %v203, 0
      %v245 = vsel %vm234, %v204, 0
      %v248 = vsel %vm234, %v205, 0
      %v251 = vsel %vm234, %v206, 0
      %v254 = vsel %vm234, %v207, 0
      %v257 = vsel %vm234, %v208, 0
      %v260 = vsel %vm234, %v209, 0
      %v263 = vsel %vm234, %v210, 0
      %v266 = vsel %vm234, %v211, 0
      %v269 = vsel %vm234, %v212, 0
      %v272 = vsel %vm234, %v213, 0
      %v275 = vsel %vm234, %v214, 0
      %v278 = vsel %vm234, %v215, 0
      %v281 = vsel %vm234, %v216, 0
      %v284 = vsel %vm234, %v217, 0
      %v287 = vsel %vm234, %v218, 0
      %v290 = vsel %vm234, %v219, 0
      %v293 = vsel %vm234, %v220, 0
      %v296 = vsel %vm234, %v221, 0
      %v299 = vsel %vm234, %v222, 0
      %v302 = vsel %vm234, %v223, 0
      %v305 = vsel %vm234, %v224, 0
      %v308 = vsel %vm234, %v225, 0
      %v311 = vsel %vm234, %v226, 0
      %v314 = vsel %vm234, %v227, 0
      %v317 = vsel %vm234, %v228, 0
      %v320 = vsel %vm234, %v229, 0
      %v323 = vsel %vm234, %v230, 0
      %v326 = vsel %vm234, %v231, 0
      %v329 = vsel %vm234, %v232, 0
      %331 = vmatprep.subr.mxu0 0.0
      %332 = vmatpush1.msra.mxu0 0.0
      %333 = vmatprep.subr.mxu0 0.0
      %334 = vmatpush1.msra.mxu0 0.0
      %335 = vmatprep.subr.mxu0 0.0
      %336 = vmatpush1.msra.mxu0 0.0
      %337 = vmatprep.subr.mxu0 0.0
      %338 = vmatpush1.msra.mxu0 0.0
      %339 = vmatprep.subr.mxu0 0.0
      %340 = vmatpush1.msra.mxu0 0.0
      %341 = vmatprep.subr.mxu0 0.0
      %342 = vmatpush1.msra.mxu0 0.0
      %343 = vmatprep.subr.mxu0 0.0
      %344 = vmatpush1.msra.mxu0 0.0
      %345 = vmatprep.subr.mxu0 0.0
      %346 = vmatpush1.msra.mxu0 0.0
      %347 = vmatprep.subr.mxu0 0.0
      %348 = vmatpush1.msra.mxu0 0.0
      %349 = vmatprep.subr.mxu0 0.0
      %350 = vmatpush1.msra.mxu0 0.0
      %351 = vmatprep.subr.mxu0 0.0
      %352 = vmatpush1.msra.mxu0 0.0
      %353 = vmatprep.subr.mxu0 0.0
      %354 = vmatpush1.msra.mxu0 0.0
      %355 = vmatprep.subr.mxu0 0.0
      %356 = vmatpush1.msra.mxu0 0.0
      %357 = vmatprep.subr.mxu0 0.0
      %358 = vmatpush1.msra.mxu0 0.0
      %359 = vmatprep.subr.mxu0 0.0
      %360 = vmatpush1.msra.mxu0 0.0
      %361 = vmatprep.subr.mxu0 0.0
      %362 = vmatpush1.msra.mxu0 %v233
      %363 = vmatprep.subr.mxu0 0.0
      %364 = vmatpush2.msra.mxu0 0.0
      %365 = vmatprep.subr.mxu0 0.0
      %366 = vmatpush2.msra.mxu0 0.0
      %367 = vmatprep.subr.mxu0 0.0
      %368 = vmatpush2.msra.mxu0 0.0
      %369 = vmatprep.subr.mxu0 0.0
      %370 = vmatpush2.msra.mxu0 0.0
      %371 = vmatprep.subr.mxu0 0.0
      %372 = vmatpush2.msra.mxu0 0.0
      %373 = vmatprep.subr.mxu0 0.0
      %374 = vmatpush2.msra.mxu0 0.0
      %375 = vmatprep.subr.mxu0 0.0
      %376 = vmatpush2.msra.mxu0 0.0
      %377 = vmatprep.subr.mxu0 0.0
      %378 = vmatpush2.msra.mxu0 0.0
      %379 = vmatprep.subr.mxu0 0.0
      %380 = vmatpush2.msra.mxu0 0.0
      %381 = vmatprep.subr.mxu0 0.0
      %382 = vmatpush2.msra.mxu0 0.0
      %383 = vmatprep.subr.mxu0 0.0
      %384 = vmatpush2.msra.mxu0 0.0
      %385 = vmatprep.subr.mxu0 0.0
      %386 = vmatpush2.msra.mxu0 0.0
      %387 = vmatprep.subr.mxu0 0.0
      %388 = vmatpush2.msra.mxu0 0.0
      %389 = vmatprep.subr.mxu0 0.0
      %390 = vmatpush2.msra.mxu0 0.0
      %391 = vmatprep.subr.mxu0 0.0
      %392 = vmatpush2.msra.mxu0 0.0
      %393 = vmatprep.subr.mxu0 0.0
      %394 = vmatpush2.msra.mxu0 0.0
      %395 = vmatprep.mubr.f32.mxu0 0.0
      %396 = vmatmul.mubr.f32.gmra.mxu0 %v236
      %v397 = vpop.f32.mrf.mxu0
      %v398 = vadd.f32 0.0, %v397
      %v399 = vpop.f32.mrf.mxu0
      %400 = vmatprep.mubr.f32.mxu0 0.0
      %401 = vmatmul.mubr.f32.gmra.mxu0 %v239
      %v402 = vpop.f32.mrf.mxu0
      %v403 = vadd.f32 0.0, %v402
      %v404 = vpop.f32.mrf.mxu0
      %405 = vmatprep.mubr.f32.mxu0 0.0
      %406 = vmatmul.mubr.f32.gmra.mxu0 %v242
      %v407 = vpop.f32.mrf.mxu0
      %v408 = vadd.f32 0.0, %v407
      %v409 = vpop.f32.mrf.mxu0
      %410 = vmatprep.mubr.f32.mxu0 0.0
      %411 = vmatmul.mubr.f32.gmra.mxu0 %v245
      %v412 = vpop.f32.mrf.mxu0
      %v413 = vadd.f32 0.0, %v412
      %v414 = vpop.f32.mrf.mxu0
      %415 = vmatprep.mubr.f32.mxu0 0.0
      %416 = vmatmul.mubr.f32.gmra.mxu0 %v248
      %v417 = vpop.f32.mrf.mxu0
      %v418 = vadd.f32 0.0, %v417
      %v419 = vpop.f32.mrf.mxu0
      %420 = vmatprep.mubr.f32.mxu0 0.0
      %421 = vmatmul.mubr.f32.gmra.mxu0 %v251
      %v422 = vpop.f32.mrf.mxu0
      %v423 = vadd.f32 0.0, %v422
      %v424 = vpop.f32.mrf.mxu0
      %425 = vmatprep.mubr.f32.mxu0 0.0
      %426 = vmatmul.mubr.f32.gmra.mxu0 %v254
      %v427 = vpop.f32.mrf.mxu0
      %v428 = vadd.f32 0.0, %v427
      %v429 = vpop.f32.mrf.mxu0
      %430 = vmatprep.mubr.f32.mxu0 0.0
      %431 = vmatmul.mubr.f32.gmra.mxu0 %v257
      %v432 = vpop.f32.mrf.mxu0
      %v433 = vadd.f32 0.0, %v432
      %v434 = vpop.f32.mrf.mxu0
      %435 = vmatprep.mubr.f32.mxu0 0.0
      %436 = vmatmul.mubr.f32.gmra.mxu0 %v260
      %v437 = vpop.f32.mrf.mxu0
      %v438 = vadd.f32 0.0, %v437
      %v439 = vpop.f32.mrf.mxu0
      %440 = vmatprep.mubr.f32.mxu0 0.0
      %441 = vmatmul.mubr.f32.gmra.mxu0 %v263
      %v442 = vpop.f32.mrf.mxu0
      %v443 = vadd.f32 0.0, %v442
      %v444 = vpop.f32.mrf.mxu0
      %445 = vmatprep.mubr.f32.mxu0 0.0
      %446 = vmatmul.mubr.f32.gmra.mxu0 %v266
      %v447 = vpop.f32.mrf.mxu0
      %v448 = vadd.f32 0.0, %v447
      %v449 = vpop.f32.mrf.mxu0
      %450 = vmatprep.mubr.f32.mxu0 0.0
      %451 = vmatmul.mubr.f32.gmra.mxu0 %v269
      %v452 = vpop.f32.mrf.mxu0
      %v453 = vadd.f32 0.0, %v452
      %v454 = vpop.f32.mrf.mxu0
      %455 = vmatprep.mubr.f32.mxu0 0.0
      %456 = vmatmul.mubr.f32.gmra.mxu0 %v272
      %v457 = vpop.f32.mrf.mxu0
      %v458 = vadd.f32 0.0, %v457
      %v459 = vpop.f32.mrf.mxu0
      %460 = vmatprep.mubr.f32.mxu0 0.0
      %461 = vmatmul.mubr.f32.gmra.mxu0 %v275
      %v462 = vpop.f32.mrf.mxu0
      %v463 = vadd.f32 0.0, %v462
      %v464 = vpop.f32.mrf.mxu0
      %465 = vmatprep.mubr.f32.mxu0 0.0
      %466 = vmatmul.mubr.f32.gmra.mxu0 %v278
      %v467 = vpop.f32.mrf.mxu0
      %v468 = vadd.f32 0.0, %v467
      %v469 = vpop.f32.mrf.mxu0
      %470 = vmatprep.mubr.f32.mxu0 0.0
      %471 = vmatmul.mubr.f32.gmra.mxu0 %v281
      %v472 = vpop.f32.mrf.mxu0
      %v473 = vadd.f32 0.0, %v472
      %v474 = vpop.f32.mrf.mxu0
      %475 = vmatprep.mubr.f32.mxu0 0.0
      %476 = vmatmul.mubr.f32.gmra.mxu0 %v284
      %v477 = vpop.f32.mrf.mxu0
      %v478 = vadd.f32 0.0, %v477
      %v479 = vpop.f32.mrf.mxu0
      %480 = vmatprep.mubr.f32.mxu0 0.0
      %481 = vmatmul.mubr.f32.gmra.mxu0 %v287
      %v482 = vpop.f32.mrf.mxu0
      %v483 = vadd.f32 0.0, %v482
      %v484 = vpop.f32.mrf.mxu0
      %485 = vmatprep.mubr.f32.mxu0 0.0
      %486 = vmatmul.mubr.f32.gmra.mxu0 %v290
      %v487 = vpop.f32.mrf.mxu0
      %v488 = vadd.f32 0.0, %v487
      %v489 = vpop.f32.mrf.mxu0
      %490 = vmatprep.mubr.f32.mxu0 0.0
      %491 = vmatmul.mubr.f32.gmra.mxu0 %v293
      %v492 = vpop.f32.mrf.mxu0
      %v493 = vadd.f32 0.0, %v492
      %v494 = vpop.f32.mrf.mxu0
      %495 = vmatprep.mubr.f32.mxu0 0.0
      %496 = vmatmul.mubr.f32.gmra.mxu0 %v296
      %v497 = vpop.f32.mrf.mxu0
      %v498 = vadd.f32 0.0, %v497
      %v499 = vpop.f32.mrf.mxu0
      %500 = vmatprep.mubr.f32.mxu0 0.0
      %501 = vmatmul.mubr.f32.gmra.mxu0 %v299
      %v502 = vpop.f32.mrf.mxu0
      %v503 = vadd.f32 0.0, %v502
      %v504 = vpop.f32.mrf.mxu0
      %505 = vmatprep.mubr.f32.mxu0 0.0
      %506 = vmatmul.mubr.f32.gmra.mxu0 %v302
      %v507 = vpop.f32.mrf.mxu0
      %v508 = vadd.f32 0.0, %v507
      %v509 = vpop.f32.mrf.mxu0
      %510 = vmatprep.mubr.f32.mxu0 0.0
      %511 = vmatmul.mubr.f32.gmra.mxu0 %v305
      %v512 = vpop.f32.mrf.mxu0
      %v513 = vadd.f32 0.0, %v512
      %v514 = vpop.f32.mrf.mxu0
      %515 = vmatprep.mubr.f32.mxu0 0.0
      %516 = vmatmul.mubr.f32.gmra.mxu0 %v308
      %v517 = vpop.f32.mrf.mxu0
      %v518 = vadd.f32 0.0, %v517
      %v519 = vpop.f32.mrf.mxu0
      %520 = vmatprep.mubr.f32.mxu0 0.0
      %521 = vmatmul.mubr.f32.gmra.mxu0 %v311
      %v522 = vpop.f32.mrf.mxu0
      %v523 = vadd.f32 0.0, %v522
      %v524 = vpop.f32.mrf.mxu0
      %525 = vmatprep.mubr.f32.mxu0 0.0
      %526 = vmatmul.mubr.f32.gmra.mxu0 %v314
      %v527 = vpop.f32.mrf.mxu0
      %v528 = vadd.f32 0.0, %v527
      %v529 = vpop.f32.mrf.mxu0
      %530 = vmatprep.mubr.f32.mxu0 0.0
      %531 = vmatmul.mubr.f32.gmra.mxu0 %v317
      %v532 = vpop.f32.mrf.mxu0
      %v533 = vadd.f32 0.0, %v532
      %v534 = vpop.f32.mrf.mxu0
      %535 = vmatprep.mubr.f32.mxu0 0.0
      %536 = vmatmul.mubr.f32.gmra.mxu0 %v320
      %v537 = vpop.f32.mrf.mxu0
      %v538 = vadd.f32 0.0, %v537
      %v539 = vpop.f32.mrf.mxu0
      %540 = vmatprep.mubr.f32.mxu0 0.0
      %541 = vmatmul.mubr.f32.gmra.mxu0 %v323
      %v542 = vpop.f32.mrf.mxu0
      %v543 = vadd.f32 0.0, %v542
      %v544 = vpop.f32.mrf.mxu0
      %545 = vmatprep.mubr.f32.mxu0 0.0
      %546 = vmatmul.mubr.f32.gmra.mxu0 %v326
      %v547 = vpop.f32.mrf.mxu0
      %v548 = vadd.f32 0.0, %v547
      %v549 = vpop.f32.mrf.mxu0
      %550 = vmatprep.mubr.f32.mxu0 0.0
      %551 = vmatmul.mubr.f32.gmra.mxu0 %v329
      %v552 = vpop.f32.mrf.mxu0
      %v553 = vadd.f32 0.0, %v552
      %v554 = vpop.f32.mrf.mxu0
      %555 = vdwg.mxu0
      %v556 = vld [vmem:[%s2] sm:$0x1]
      %v558 = vlaneseq
      %v559 = vshrl.u32 %v558, 7
      %v560 = vsub.s32 0, %v559
      %v561 = vrot.slane %v556, %v560
      %v563 = vmul.f32 %v398, %v561
      %v564 = vmul.f32 %v403, %v561
      %v565 = vmul.f32 %v408, %v561
      %v566 = vmul.f32 %v413, %v561
      %v567 = vmul.f32 %v418, %v561
      %v568 = vmul.f32 %v423, %v561
      %v569 = vmul.f32 %v428, %v561
      %v570 = vmul.f32 %v433, %v561
      %v571 = vmul.f32 %v438, %v561
      %v572 = vmul.f32 %v443, %v561
      %v573 = vmul.f32 %v448, %v561
      %v574 = vmul.f32 %v453, %v561
      %v575 = vmul.f32 %v458, %v561
      %v576 = vmul.f32 %v463, %v561
      %v577 = vmul.f32 %v468, %v561
      %v578 = vmul.f32 %v473, %v561
      %v579 = vmul.f32 %v478, %v561
      %v580 = vmul.f32 %v483, %v561
      %v581 = vmul.f32 %v488, %v561
      %v582 = vmul.f32 %v493, %v561
      %v583 = vmul.f32 %v498, %v561
      %v584 = vmul.f32 %v503, %v561
      %v585 = vmul.f32 %v508, %v561
      %v586 = vmul.f32 %v513, %v561
      %v587 = vmul.f32 %v518, %v561
      %v588 = vmul.f32 %v523, %v561
      %v589 = vmul.f32 %v528, %v561
      %v590 = vmul.f32 %v533, %v561
      %v591 = vmul.f32 %v538, %v561
      %v592 = vmul.f32 %v543, %v561
      %v593 = vmul.f32 %v548, %v561
      %v594 = vmul.f32 %v553, %v561
      %v595 = vld [vmem:[%s3] sm:$0x1]
      %v597 = vlaneseq
      %v598 = vshrl.u32 %v597, 7
      %v599 = vsub.s32 0, %v598
      %v600 = vrot.slane %v595, %v599
      %v602 = vadd.f32 %v563, %v600
      %v603 = vadd.f32 %v564, %v600
      %v604 = vadd.f32 %v565, %v600
      %v605 = vadd.f32 %v566, %v600
      %v606 = vadd.f32 %v567, %v600
      %v607 = vadd.f32 %v568, %v600
      %v608 = vadd.f32 %v569, %v600
      %v609 = vadd.f32 %v570, %v600
      %v610 = vadd.f32 %v571, %v600
      %v611 = vadd.f32 %v572, %v600
      %v612 = vadd.f32 %v573, %v600
      %v613 = vadd.f32 %v574, %v600
      %v614 = vadd.f32 %v575, %v600
      %v615 = vadd.f32 %v576, %v600
      %v616 = vadd.f32 %v577, %v600
      %v617 = vadd.f32 %v578, %v600
      %v618 = vadd.f32 %v579, %v600
      %v619 = vadd.f32 %v580, %v600
      %v620 = vadd.f32 %v581, %v600
      %v621 = vadd.f32 %v582, %v600
      %v622 = vadd.f32 %v583, %v600
      %v623 = vadd.f32 %v584, %v600
      %v624 = vadd.f32 %v585, %v600
      %v625 = vadd.f32 %v586, %v600
      %v626 = vadd.f32 %v587, %v600
      %v627 = vadd.f32 %v588, %v600
      %v628 = vadd.f32 %v589, %v600
      %v629 = vadd.f32 %v590, %v600
      %v630 = vadd.f32 %v591, %v600
      %v631 = vadd.f32 %v592, %v600
      %v632 = vadd.f32 %v593, %v600
      %v633 = vadd.f32 %v594, %v600
      %v634 = vadd.f32 %v602, 3.0
      %v635 = vadd.f32 %v603, 3.0
      %v636 = vadd.f32 %v604, 3.0
      %v637 = vadd.f32 %v605, 3.0
      %v638 = vadd.f32 %v606, 3.0
      %v639 = vadd.f32 %v607, 3.0
      %v640 = vadd.f32 %v608, 3.0
      %v641 = vadd.f32 %v609, 3.0
      %v642 = vadd.f32 %v610, 3.0
      %v643 = vadd.f32 %v611, 3.0
      %v644 = vadd.f32 %v612, 3.0
      %v645 = vadd.f32 %v613, 3.0
      %v646 = vadd.f32 %v614, 3.0
      %v647 = vadd.f32 %v615, 3.0
      %v648 = vadd.f32 %v616, 3.0
      %v649 = vadd.f32 %v617, 3.0
      %v650 = vadd.f32 %v618, 3.0
      %v651 = vadd.f32 %v619, 3.0
      %v652 = vadd.f32 %v620, 3.0
      %v653 = vadd.f32 %v621, 3.0
      %v654 = vadd.f32 %v622, 3.0
      %v655 = vadd.f32 %v623, 3.0
      %v656 = vadd.f32 %v624, 3.0
      %v657 = vadd.f32 %v625, 3.0
      %v658 = vadd.f32 %v626, 3.0
      %v659 = vadd.f32 %v627, 3.0
      %v660 = vadd.f32 %v628, 3.0
      %v661 = vadd.f32 %v629, 3.0
      %v662 = vadd.f32 %v630, 3.0
      %v663 = vadd.f32 %v631, 3.0
      %v664 = vadd.f32 %v632, 3.0
      %v665 = vadd.f32 %v633, 3.0
      %v666 = vmax.f32 %v634, 0.0
      %v667 = vmax.f32 %v635, 0.0
      %v668 = vmax.f32 %v636, 0.0
      %v669 = vmax.f32 %v637, 0.0
      %v670 = vmax.f32 %v638, 0.0
      %v671 = vmax.f32 %v639, 0.0
      %v672 = vmax.f32 %v640, 0.0
      %v673 = vmax.f32 %v641, 0.0
      %v674 = vmax.f32 %v642, 0.0
      %v675 = vmax.f32 %v643, 0.0
      %v676 = vmax.f32 %v644, 0.0
      %v677 = vmax.f32 %v645, 0.0
      %v678 = vmax.f32 %v646, 0.0
      %v679 = vmax.f32 %v647, 0.0
      %v680 = vmax.f32 %v648, 0.0
      %v681 = vmax.f32 %v649, 0.0
      %v682 = vmax.f32 %v650, 0.0
      %v683 = vmax.f32 %v651, 0.0
      %v684 = vmax.f32 %v652, 0.0
      %v685 = vmax.f32 %v653, 0.0
      %v686 = vmax.f32 %v654, 0.0
      %v687 = vmax.f32 %v655, 0.0
      %v688 = vmax.f32 %v656, 0.0
      %v689 = vmax.f32 %v657, 0.0
      %v690 = vmax.f32 %v658, 0.0
      %v691 = vmax.f32 %v659, 0.0
      %v692 = vmax.f32 %v660, 0.0
      %v693 = vmax.f32 %v661, 0.0
      %v694 = vmax.f32 %v662, 0.0
      %v695 = vmax.f32 %v663, 0.0
      %v696 = vmax.f32 %v664, 0.0
      %v697 = vmax.f32 %v665, 0.0
      %v698 = vmin.f32 %v666, 6.0
      %v699 = vmin.f32 %v667, 6.0
      %v700 = vmin.f32 %v668, 6.0
      %v701 = vmin.f32 %v669, 6.0
      %v702 = vmin.f32 %v670, 6.0
      %v703 = vmin.f32 %v671, 6.0
      %v704 = vmin.f32 %v672, 6.0
      %v705 = vmin.f32 %v673, 6.0
      %v706 = vmin.f32 %v674, 6.0
      %v707 = vmin.f32 %v675, 6.0
      %v708 = vmin.f32 %v676, 6.0
      %v709 = vmin.f32 %v677, 6.0
      %v710 = vmin.f32 %v678, 6.0
      %v711 = vmin.f32 %v679, 6.0
      %v712 = vmin.f32 %v680, 6.0
      %v713 = vmin.f32 %v681, 6.0
      %v714 = vmin.f32 %v682, 6.0
      %v715 = vmin.f32 %v683, 6.0
      %v716 = vmin.f32 %v684, 6.0
      %v717 = vmin.f32 %v685, 6.0
      %v718 = vmin.f32 %v686, 6.0
      %v719 = vmin.f32 %v687, 6.0
      %v720 = vmin.f32 %v688, 6.0
      %v721 = vmin.f32 %v689, 6.0
      %v722 = vmin.f32 %v690, 6.0
      %v723 = vmin.f32 %v691, 6.0
      %v724 = vmin.f32 %v692, 6.0
      %v725 = vmin.f32 %v693, 6.0
      %v726 = vmin.f32 %v694, 6.0
      %v727 = vmin.f32 %v695, 6.0
      %v728 = vmin.f32 %v696, 6.0
      %v729 = vmin.f32 %v697, 6.0
      %v730 = vmul.f32 %v602, %v698
      %v731 = vmul.f32 %v603, %v699
      %v732 = vmul.f32 %v604, %v700
      %v733 = vmul.f32 %v605, %v701
      %v734 = vmul.f32 %v606, %v702
      %v735 = vmul.f32 %v607, %v703
      %v736 = vmul.f32 %v608, %v704
      %v737 = vmul.f32 %v609, %v705
      %v738 = vmul.f32 %v610, %v706
      %v739 = vmul.f32 %v611, %v707
      %v740 = vmul.f32 %v612, %v708
      %v741 = vmul.f32 %v613, %v709
      %v742 = vmul.f32 %v614, %v710
      %v743 = vmul.f32 %v615, %v711
      %v744 = vmul.f32 %v616, %v712
      %v745 = vmul.f32 %v617, %v713
      %v746 = vmul.f32 %v618, %v714
      %v747 = vmul.f32 %v619, %v715
      %v748 = vmul.f32 %v620, %v716
      %v749 = vmul.f32 %v621, %v717
      %v750 = vmul.f32 %v622, %v718
      %v751 = vmul.f32 %v623, %v719
      %v752 = vmul.f32 %v624, %v720
      %v753 = vmul.f32 %v625, %v721
      %v754 = vmul.f32 %v626, %v722
      %v755 = vmul.f32 %v627, %v723
      %v756 = vmul.f32 %v628, %v724
      %v757 = vmul.f32 %v629, %v725
      %v758 = vmul.f32 %v630, %v726
      %v759 = vmul.f32 %v631, %v727
      %v760 = vmul.f32 %v632, %v728
      %v761 = vmul.f32 %v633, %v729
      %v762 = vmul.f32 %v730, 0.16666667
      %v763 = vmul.f32 %v731, 0.16666667
      %v764 = vmul.f32 %v732, 0.16666667
      %v765 = vmul.f32 %v733, 0.16666667
      %v766 = vmul.f32 %v734, 0.16666667
      %v767 = vmul.f32 %v735, 0.16666667
      %v768 = vmul.f32 %v736, 0.16666667
      %v769 = vmul.f32 %v737, 0.16666667
      %v770 = vmul.f32 %v738, 0.16666667
      %v771 = vmul.f32 %v739, 0.16666667
      %v772 = vmul.f32 %v740, 0.16666667
      %v773 = vmul.f32 %v741, 0.16666667
      %v774 = vmul.f32 %v742, 0.16666667
      %v775 = vmul.f32 %v743, 0.16666667
      %v776 = vmul.f32 %v744, 0.16666667
      %v777 = vmul.f32 %v745, 0.16666667
      %v778 = vmul.f32 %v746, 0.16666667
      %v779 = vmul.f32 %v747, 0.16666667
      %v780 = vmul.f32 %v748, 0.16666667
      %v781 = vmul.f32 %v749, 0.16666667
      %v782 = vmul.f32 %v750, 0.16666667
      %v783 = vmul.f32 %v751, 0.16666667
      %v784 = vmul.f32 %v752, 0.16666667
      %v785 = vmul.f32 %v753, 0.16666667
      %v786 = vmul.f32 %v754, 0.16666667
      %v787 = vmul.f32 %v755, 0.16666667
      %v788 = vmul.f32 %v756, 0.16666667
      %v789 = vmul.f32 %v757, 0.16666667
      %v790 = vmul.f32 %v758, 0.16666667
      %v791 = vmul.f32 %v759, 0.16666667
      %v792 = vmul.f32 %v760, 0.16666667
      %v793 = vmul.f32 %v761, 0.16666667
      %vm794 = vcmask 31744
      %795 = vst.msk [vmem:[%s199] sm:$0xff] %vm794, %v762
      %796 = vst.msk [vmem:[%s199 + $0x8] sm:$0xff] %vm794, %v763
      %797 = vst.msk [vmem:[%s199 + $0x10] sm:$0xff] %vm794, %v764
      %798 = vst.msk [vmem:[%s199 + $0x18] sm:$0xff] %vm794, %v765
      %799 = vst.msk [vmem:[%s199 + $0x20] sm:$0xff] %vm794, %v766
      %800 = vst.msk [vmem:[%s199 + $0x28] sm:$0xff] %vm794, %v767
      %801 = vst.msk [vmem:[%s199 + $0x30] sm:$0xff] %vm794, %v768
      %802 = vst.msk [vmem:[%s199 + $0x38] sm:$0xff] %vm794, %v769
      %803 = vst.msk [vmem:[%s199 + $0x40] sm:$0xff] %vm794, %v770
      %804 = vst.msk [vmem:[%s199 + $0x48] sm:$0xff] %vm794, %v771
      %805 = vst.msk [vmem:[%s199 + $0x50] sm:$0xff] %vm794, %v772
      %806 = vst.msk [vmem:[%s199 + $0x58] sm:$0xff] %vm794, %v773
      %807 = vst.msk [vmem:[%s199 + $0x60] sm:$0xff] %vm794, %v774
      %808 = vst.msk [vmem:[%s199 + $0x68] sm:$0xff] %vm794, %v775
      %809 = vst.msk [vmem:[%s199 + $0x70] sm:$0xff] %vm794, %v776
      %810 = vst.msk [vmem:[%s199 + $0x78] sm:$0xff] %vm794, %v777
      %811 = vst.msk [vmem:[%s199 + $0x80] sm:$0xff] %vm794, %v778
      %812 = vst.msk [vmem:[%s199 + $0x88] sm:$0xff] %vm794, %v779
      %813 = vst.msk [vmem:[%s199 + $0x90] sm:$0xff] %vm794, %v780
      %814 = vst.msk [vmem:[%s199 + $0x98] sm:$0xff] %vm794, %v781
      %815 = vst.msk [vmem:[%s199 + $0xa0] sm:$0xff] %vm794, %v782
      %816 = vst.msk [vmem:[%s199 + $0xa8] sm:$0xff] %vm794, %v783
      %817 = vst.msk [vmem:[%s199 + $0xb0] sm:$0xff] %vm794, %v784
      %818 = vst.msk [vmem:[%s199 + $0xb8] sm:$0xff] %vm794, %v785
      %819 = vst.msk [vmem:[%s199 + $0xc0] sm:$0xff] %vm794, %v786
      %820 = vst.msk [vmem:[%s199 + $0xc8] sm:$0xff] %vm794, %v787
      %821 = vst.msk [vmem:[%s199 + $0xd0] sm:$0xff] %vm794, %v788
      %822 = vst.msk [vmem:[%s199 + $0xd8] sm:$0xff] %vm794, %v789
      %823 = vst.msk [vmem:[%s199 + $0xe0] sm:$0xff] %vm794, %v790
      %824 = vst.msk [vmem:[%s199 + $0xe8] sm:$0xff] %vm794, %v791
      %825 = vst.msk [vmem:[%s199 + $0xf0] sm:$0xff] %vm794, %v792
      %826 = vst.msk [vmem:[%s199 + $0xf8] sm:$0xff] %vm794, %v793
      %s827 = smul.u32 32, %s15
      %p828 = scmp.lt.s32.totalorder %s827, 63
      %s829 = scalar_select %p828, %s827, 63
      %s830 = smul.addr %s829, 8
      %s831 = scalar_lea.vmem %s4, %s830
      // Predicated region
      $region37: #{tpu_custom_call.1} parent=35 // pred_check
        %p832 = pneg %p122
      $region38: #{tpu_custom_call.1} parent=35 // pred_check_branch
        %834 = sbr.rel (%p832) target = $region40
      $region39: #{tpu_custom_call.1} parent=35 // pred_region
        %s835 = smul.u32 32, %s15
      $region40: #{tpu_custom_call.1} parent=35 // pred_fallthru
        _
    $region36: #{tpu_custom_call.1} parent=5 // pred_fallthru
      _
    %p836 = scmp.le.s32.totalorder 2, %s10
    // Predicated region
    $region41: #{tpu_custom_call.1} parent=5 // pred_check
      %p837 = pneg %p836
    $region42: #{tpu_custom_call.1} parent=5 // pred_check_branch
      %839 = sbr.rel (%p837) target = $region44
    $region43: #{tpu_custom_call.1} parent=5 // pred_region
      %s840 = ssub.s32 %s10, 2
      // Predicated region
      $region45: #{tpu_custom_call.1} parent=43 // pred_check
        %p841 = pneg %p128
      $region46: #{tpu_custom_call.1} parent=43 // pred_check_branch
        %843 = sbr.rel (%p841) target = $region48
      $region47: #{tpu_custom_call.1} parent=43 // pred_region
        %s844 = smul.u32 32, %s16
        %p845 = scmp.lt.s32.totalorder %s844, 63
        %s846 = scalar_select %p845, %s844, 63
        %s847 = smul.addr %s846, 8
        %s848 = scalar_lea.vmem %s4, %s847
      $region48: #{tpu_custom_call.1} parent=43 // pred_fallthru
        _
    $region44: #{tpu_custom_call.1} parent=5 // pred_fallthru
      _
  $region6: #{tpu_custom_call.1} parent=0 // loop_footer
    %s14 = sadd.s32 1, %s10
  $region7: #{tpu_custom_call.1} parent=0 // loop_footer_branch
    %9 = sbr.rel target = $region3
  $region8: #{tpu_custom_call.1} parent=0 // loop_exit
    _

</llo_original>
